<compile_context>
chip_gen: v6e
topology: v6e:2x2x1
jax: 0.10.0
libtpu: 0.0.40
codegen_flags: <defaults>
</compile_context>

<pallas_src>
import functools
import math

import jax
import jax.numpy as jnp
from jax.experimental import pallas as pl
from jax.experimental.pallas import tpu as pltpu

_LANE = 128
_SUBLANE = 8
_WEIGHT_VMEM_BUDGET = 24 << 20  # keep resident weight block under ~24 MiB


def _round_up(x, m):
    return (x + m - 1) // m * m


def _num_tensorcores():
    """Best-effort TensorCore count (v7x: 2/chip, v5e/v6e: 1). Defaults to 1."""
    try:
        info = pltpu.get_tpu_info()
    except Exception:
        return 1
    for name in ("num_tensorcores", "tensorcores_per_chip", "num_cores",
                 "cores_per_chip", "core_count"):
        v = getattr(info, name, None)
        if isinstance(v, int) and 1 <= v <= 16:
            return v
    return 1


def _linear_kernel(x_ref, w_ref, b_ref, o_ref):
    """o_tile = x_tile @ W_tile + b_tile  (W already [f_in, f_out]; bias [1, f_out])."""
    acc = jnp.dot(x_ref[...], w_ref[...], preferred_element_type=jnp.float32)
    o_ref[...] = (acc + b_ref[...]).astype(o_ref.dtype)


@functools.partial(jax.jit, static_argnames=("tile_m", "single_buffer_params"))
def _linear_forward_impl(x, w, b, *, tile_m, single_buffer_params):
    n, f_in = x.shape
    f_in_w, f_out_p = w.shape
    assert f_in == f_in_w, (f_in, f_in_w)
    assert f_out_p % _LANE == 0, f_out_p

    itemsize = jnp.dtype(x.dtype).itemsize
    n_cores = _num_tensorcores()

    # ---- row tile ---------------------------------------------------------
    if tile_m is None:
        tile_m = 1024 if n_cores > 1 else 512  # v7x: fewer, larger steps
    n8 = _round_up(max(n, 1), _SUBLANE)
    # >=2 steps per TensorCore on multi-TC parts (per-core DMA/compute overlap);
    # one big tile on single-TC parts; never more steps than 8-row groups.
    min_steps = (2 * n_cores) if n_cores > 1 else 1
    nt_m = max(pl.cdiv(n8, tile_m), min(min_steps, pl.cdiv(n8, _SUBLANE)))
    tm = _round_up(pl.cdiv(n8, nt_m), _SUBLANE)
    grid_m = pl.cdiv(n, tm)  # last block is clipped by Pallas; x is never padded

    # ---- out-feature tile (keep resident weight block within VMEM budget) --
    f_in_sub = _round_up(f_in, _SUBLANE)
    if f_in_sub * f_out_p * itemsize <= _WEIGHT_VMEM_BUDGET:
        tn = f_out_p
    else:
        tn = max(_LANE,
                 (_WEIGHT_VMEM_BUDGET // (2 * f_in_sub * itemsize)) // _LANE * _LANE)
        tn = min(tn, f_out_p)
    grid_n = pl.cdiv(f_out_p, tn)

    # Weight/bias block index never changes when grid_n == 1: fetch once and keep
    # a single VMEM buffer (halves their footprint).
    single_buf = (grid_n == 1) and single_buffer_params
    param_spec_kwargs = dict(pipeline_mode=pl.Buffered(1)) if single_buf else {}
    param_bufs = 1 if single_buf else 2

    # ---- explicit VMEM limit (x tile is lane-padded to 128 in VMEM) --------
    f_in_lane = _round_up(f_in, _LANE)
    vmem_needed = (
        2 * tm * f_in_lane * itemsize             # x tile, double-buffered
        + param_bufs * f_in_sub * tn * itemsize   # weight block
        + param_bufs * _SUBLANE * tn * itemsize   # bias block
        + 2 * tm * tn * itemsize                  # output tile, double-buffered
    )
    vmem_limit = min(max(int(vmem_needed * 1.25) + (2 << 20), 4 << 20), 100 << 20)

    w_reads = 1 if grid_n == 1 else grid_m
    cost = pl.CostEstimate(
        flops=int(2 * n * f_in * f_out_p),
        transcendentals=0,
        bytes_accessed=int(itemsize * (n * f_in + w_reads * f_in * f_out_p
                                       + f_out_p + n * f_out_p)),
    )

    return pl.pallas_call(
        _linear_kernel,
        out_shape=jax.ShapeDtypeStruct((n, f_out_p), x.dtype),
        grid_spec=pltpu.PrefetchScalarGridSpec(
            num_scalar_prefetch=0,
            grid=(grid_m, grid_n),
            in_specs=[
                pl.BlockSpec((tm, f_in), lambda i, j: (i, 0)),          # x rows
                pl.BlockSpec((f_in, tn), lambda i, j: (0, j),           # weight
                             **param_spec_kwargs),
                pl.BlockSpec((1, tn), lambda i, j: (0, j),              # bias
                             **param_spec_kwargs),
            ],
            out_specs=pl.BlockSpec((tm, tn), lambda i, j: (i, j)),
        ),
        compiler_params=pltpu.CompilerParams(
            dimension_semantics=("parallel", "parallel"),
            vmem_limit_bytes=vmem_limit),
        cost_estimate=cost,
    )(x, w, b)


def linear_forward(x, params, *, tile_m=None, return_padded=False):
    """LinearLayer forward: y = x @ W.T + b.  Accepts any leading batch dims.

    `params` comes from init_linear_params / pack_linear_params (weight already
    transposed to [in, out] and lane-padded to a multiple of 128).
    """
    w, b = params["w"], params["b"]
    f_out = params["out_features"]
    f_out_p = w.shape[1]

    lead = x.shape[:-1]
    x2 = x.reshape((-1, x.shape[-1])) if x.ndim != 2 else x

    try:
        y = _linear_forward_impl(x2, w, b, tile_m=tile_m, single_buffer_params=True)
    except Exception:
        # Fallback for jax versions that reject single-buffered block specs.
        y = _linear_forward_impl(x2, w, b, tile_m=tile_m, single_buffer_params=False)

    if not return_padded and f_out != f_out_p:
        y = y[:, :f_out]  # lane-pad strip only; rows are never padded
        out_feat = f_out
    else:
        out_feat = y.shape[-1]
    return y.reshape(lead + (out_feat,))


def pack_linear_params(w, b):
    """One-time prep: weight [in, out] (PyTorch weight transposed) and bias are
    zero-padded to a lane-dense out width so linear_forward never pads/copies."""
    in_features, f_out = w.shape
    b = jnp.asarray(b).reshape(1, f_out)
    f_out_p = _round_up(max(f_out, _LANE), _LANE)
    if f_out_p != f_out:
        w = jnp.pad(w, ((0, 0), (0, f_out_p - f_out)))
        b = jnp.pad(b, ((0, 0), (0, f_out_p - f_out)))
    return {"w": w, "b": b, "in_features": in_features, "out_features": f_out}


def init_linear_params(key, in_features, out_features):
    """Matches LinearLayer: weight ~ U(-1/in, 1/in) (custom init_weights);
    bias keeps the nn.Linear default U(-1/sqrt(in), 1/sqrt(in))."""
    k_w, k_b = jax.random.split(key)
    w_bound = 1.0 / in_features
    b_bound = 1.0 / math.sqrt(in_features)
    w = jax.random.uniform(k_w, (in_features, out_features), jnp.float32,
                           -w_bound, w_bound)
    b = jax.random.uniform(k_b, (1, out_features), jnp.float32,
                           -b_bound, b_bound)
    return pack_linear_params(w, b)


def linear_reference(x, params):
    """Pure-JAX reference (uses the unpadded columns)."""
    f_out = params["out_features"]
    return x @ params["w"][:, :f_out] + params["b"][:, :f_out]


if __name__ == "__main__":
    key = jax.random.PRNGKey(0)
    k_x, k_p, k_x2, k_p2 = jax.random.split(key, 4)

    # CoordNet-like small layer; out_features not a multiple of 128 exercises the
    # lane-padded output + column strip path.
    N, IN_FEATURES, OUT_FEATURES = 200, 32, 64
    x = jax.random.uniform(k_x, (N, IN_FEATURES), jnp.float32, -1.0, 1.0)
    params = init_linear_params(k_p, IN_FEATURES, OUT_FEATURES)

    y = jax.block_until_ready(linear_forward(x, params))
    y_ref = linear_reference(x, params)
    assert y.shape == (N, OUT_FEATURES), y.shape
    assert jnp.allclose(y, y_ref, atol=1e-4, rtol=1e-4), "mismatch vs reference"

    # Ragged row count (does not divide any tile -> exercises Pallas last-block
    # clipping, no jnp.pad of x) and lane-aligned out_features (no slice at all).
    N2, OUT2 = 1030, 128
    x2 = jax.random.uniform(k_x2, (N2, IN_FEATURES), jnp.float32, -1.0, 1.0)
    params2 = init_linear_params(k_p2, IN_FEATURES, OUT2)
    y2 = jax.block_until_ready(linear_forward(x2, params2))
    y2_ref = linear_reference(x2, params2)
    assert y2.shape == (N2, OUT2), y2.shape
    assert jnp.allclose(y2, y2_ref, atol=1e-4, rtol=1e-4), "mismatch (clipped tail)"

    print("KERNEL_OK")
</pallas_src>

<mosaic_0001>
module attributes {stable_mosaic.version = 11 : i64} {
  func.func @_linear_kernel(%arg0: i32, %arg1: i32, %arg2: memref<200x32xf32, #tpu.memory_space<vmem>>, %arg3: memref<32x128xf32, #tpu.memory_space<vmem>>, %arg4: memref<1x128xf32, #tpu.memory_space<vmem>>, %arg5: memref<200x128xf32, #tpu.memory_space<vmem>>) attributes {dimension_semantics = [#tpu.dimension_semantics<parallel>, #tpu.dimension_semantics<parallel>], iteration_bounds = array<i64: 1, 1>, scalar_prefetch = 0 : i64, scratch_operands = 0 : i64, tpu.core_type = #tpu.core_type<tc>, window_params = [{transform_indices = @transform_0, window_bounds = array<i64: 200, 32>}, {pipeline_mode = #tpu.pipeline_mode<synchronous>, transform_indices = @transform_1, window_bounds = array<i64: 32, 128>}, {pipeline_mode = #tpu.pipeline_mode<synchronous>, transform_indices = @transform_2, window_bounds = array<i64: 1, 128>}, {transform_indices = @transform_3, window_bounds = array<i64: 200, 128>}]} {
    %c0 = arith.constant 0 : index
    %c0_0 = arith.constant 0 : index
    %0 = vector.load %arg2[%c0, %c0_0] : memref<200x32xf32, #tpu.memory_space<vmem>>, vector<200x32xf32>
    %c0_1 = arith.constant 0 : index
    %c0_2 = arith.constant 0 : index
    %1 = vector.load %arg3[%c0_1, %c0_2] : memref<32x128xf32, #tpu.memory_space<vmem>>, vector<32x128xf32>
    %cst = arith.constant dense<0.000000e+00> : vector<200x128xf32>
    %2 = tpu.matmul %0, %1, %cst {dimension_numbers = #tpu.dot_dimension_numbers<[1], [0], [0], [1], [0, 0, 1, 1], [], []>} : vector<200x32xf32>, vector<32x128xf32>, vector<200x128xf32> -> vector<200x128xf32>
    %c0_3 = arith.constant 0 : index
    %c0_4 = arith.constant 0 : index
    %3 = vector.load %arg4[%c0_3, %c0_4] : memref<1x128xf32, #tpu.memory_space<vmem>>, vector<1x128xf32>
    %4 = vector.broadcast %3 : vector<1x128xf32> to vector<200x128xf32>
    %5 = arith.addf %2, %4 : vector<200x128xf32>
    %c0_5 = arith.constant 0 : index
    %c0_6 = arith.constant 0 : index
    %6 = vector.load %arg5[%c0_5, %c0_6] : memref<200x128xf32, #tpu.memory_space<vmem>>, vector<200x128xf32>
    tpu.vector_store %arg5[%c0_5, %c0_6], %5 {strides = array<i32>} : memref<200x128xf32, #tpu.memory_space<vmem>>, vector<200x128xf32>,
    return
  }
  func.func @transform_0(%arg0: i32, %arg1: i32) -> (i32, i32) {
    %c0_i32 = arith.constant 0 : i32
    %c0_i32_0 = arith.constant 0 : i32
    return %arg0, %c0_i32 : i32, i32
  }
  func.func @transform_1(%arg0: i32, %arg1: i32) -> (i32, i32) {
    %c0_i32 = arith.constant 0 : i32
    %c0_i32_0 = arith.constant 0 : i32
    return %c0_i32, %arg1 : i32, i32
  }
  func.func @transform_2(%arg0: i32, %arg1: i32) -> (i32, i32) {
    %c0_i32 = arith.constant 0 : i32
    %c0_i32_0 = arith.constant 0 : i32
    return %c0_i32, %arg1 : i32, i32
  }
  func.func @transform_3(%arg0: i32, %arg1: i32) -> (i32, i32) {
    %c0_i32 = arith.constant 0 : i32
    return %arg0, %arg1 : i32, i32
  }
}

module attributes {stable_mosaic.version = 11 : i64} {
  func.func @_linear_kernel(%arg0: i32, %arg1: i32, %arg2: memref<200x32xf32, #tpu.memory_space<vmem>>, %arg3: memref<32x128xf32, #tpu.memory_space<vmem>>, %arg4: memref<1x128xf32, #tpu.memory_space<vmem>>, %arg5: memref<200x128xf32, #tpu.memory_space<vmem>>) attributes {dimension_semantics = [#tpu.dimension_semantics<parallel>, #tpu.dimension_semantics<parallel>], iteration_bounds = array<i64: 1, 1>, scalar_prefetch = 0 : i64, scratch_operands = 0 : i64, tpu.core_type = #tpu.core_type<tc>, window_params = [{transform_indices = @transform_0, window_bounds = array<i64: 200, 32>}, {transform_indices = @transform_1, window_bounds = array<i64: 32, 128>}, {transform_indices = @transform_2, window_bounds = array<i64: 1, 128>}, {transform_indices = @transform_3, window_bounds = array<i64: 200, 128>}]} {
    %c0 = arith.constant 0 : index
    %c0_0 = arith.constant 0 : index
    %0 = vector.load %arg2[%c0, %c0_0] : memref<200x32xf32, #tpu.memory_space<vmem>>, vector<200x32xf32>
    %c0_1 = arith.constant 0 : index
    %c0_2 = arith.constant 0 : index
    %1 = vector.load %arg3[%c0_1, %c0_2] : memref<32x128xf32, #tpu.memory_space<vmem>>, vector<32x128xf32>
    %cst = arith.constant dense<0.000000e+00> : vector<200x128xf32>
    %2 = tpu.matmul %0, %1, %cst {dimension_numbers = #tpu.dot_dimension_numbers<[1], [0], [0], [1], [0, 0, 1, 1], [], []>} : vector<200x32xf32>, vector<32x128xf32>, vector<200x128xf32> -> vector<200x128xf32>
    %c0_3 = arith.constant 0 : index
    %c0_4 = arith.constant 0 : index
    %3 = vector.load %arg4[%c0_3, %c0_4] : memref<1x128xf32, #tpu.memory_space<vmem>>, vector<1x128xf32>
    %4 = vector.broadcast %3 : vector<1x128xf32> to vector<200x128xf32>
    %5 = arith.addf %2, %4 : vector<200x128xf32>
    %c0_5 = arith.constant 0 : index
    %c0_6 = arith.constant 0 : index
    %6 = vector.load %arg5[%c0_5, %c0_6] : memref<200x128xf32, #tpu.memory_space<vmem>>, vector<200x128xf32>
    tpu.vector_store %arg5[%c0_5, %c0_6], %5 {strides = array<i32>} : memref<200x128xf32, #tpu.memory_space<vmem>>, vector<200x128xf32>,
    return
  }
  func.func @transform_0(%arg0: i32, %arg1: i32) -> (i32, i32) {
    %c0_i32 = arith.constant 0 : i32
    %c0_i32_0 = arith.constant 0 : i32
    return %arg0, %c0_i32 : i32, i32
  }
  func.func @transform_1(%arg0: i32, %arg1: i32) -> (i32, i32) {
    %c0_i32 = arith.constant 0 : i32
    %c0_i32_0 = arith.constant 0 : i32
    return %c0_i32, %arg1 : i32, i32
  }
  func.func @transform_2(%arg0: i32, %arg1: i32) -> (i32, i32) {
    %c0_i32 = arith.constant 0 : i32
    %c0_i32_0 = arith.constant 0 : i32
    return %c0_i32, %arg1 : i32, i32
  }
  func.func @transform_3(%arg0: i32, %arg1: i32) -> (i32, i32) {
    %c0_i32 = arith.constant 0 : i32
    return %arg0, %arg1 : i32, i32
  }
}

</mosaic_0001>

<llo_original>
// kernel: _linear_forward_impl.1
$region0: #{_linear_forward_impl.1}
  #allocation0 [shape = 'u32[]', space=smem, size = 0x4, offset = 0x4, fixed_abs, tag = 'smem constant byte address 0x4 - core index']
  #allocation1 [shape = 'u32[144,128]{1,0:T(1,128)}', space=vmem, size = 0x12000, scoped, tag = 'internal scratch']
  %s0 = inlined_call_operand.vmem [shape: f32[200,32], index: 0, kind: input, shape index: {}]
  %s1 = inlined_call_operand.vmem [shape: f32[32,128], index: 1, kind: input, shape index: {}]
  %s2 = inlined_call_operand.vmem [shape: f32[1,128], index: 2, kind: input, shape index: {}]
  %s3 = inlined_call_operand.hbm [shape: f32[200,128], index: 3, kind: output, shape index: {}]
  %s4 = sld [smem:[#allocation0]]
  $region22: #{_linear_forward_impl.1} parent=0
    _
  %s6 = ssub.s32 1, %s4
  %s7 = scalar_select 0, %s6, %s4
  $region1: #{_linear_forward_impl.1} parent=0
    #allocation2 [shape = 'u8[102400]{0}', space=vmem, size = 0x19000, scoped, tag = 'output window, operand 0, single buffered']
    #allocation3 [shape = 's32[1]{0}', space=sflag, size = 0x4, scoped, tag = 'scoped memory for _linear_forward_impl.1']
    %8 = vsyncpa [#allocation3], 0
    // Predicated region
    $region2: #{_linear_forward_impl.1} parent=1 // pred_check
      _
    $region3: #{_linear_forward_impl.1} parent=1 // pred_check_branch
      %10 = sbr.rel (0) target = $region5
    $region4: #{_linear_forward_impl.1} parent=1 // pred_region
      _
    $region5: #{_linear_forward_impl.1} parent=1 // pred_fallthru
      _
    // Predicated region
    $region6: #{_linear_forward_impl.1} parent=1 // pred_check
      _
    $region7: #{_linear_forward_impl.1} parent=1 // pred_check_branch
      %12 = sbr.rel (0) target = $region9
    $region8: #{_linear_forward_impl.1} parent=1 // pred_region
      _
    $region9: #{_linear_forward_impl.1} parent=1 // pred_fallthru
      _
    // Predicated region
    $region10: #{_linear_forward_impl.1} parent=1 // pred_check
      _
    $region11: #{_linear_forward_impl.1} parent=1 // pred_check_branch
      %14 = sbr.rel (0) target = $region13
    $region12: #{_linear_forward_impl.1} parent=1 // pred_region
      _
    $region13: #{_linear_forward_impl.1} parent=1 // pred_fallthru
      _
    %v15 = vld [vmem:[%s0] sm:$0xff]
    %v16 = vld [vmem:[%s0 + $0x8] sm:$0xff]
    %v17 = vld [vmem:[%s0 + $0x10] sm:$0xff]
    %v18 = vld [vmem:[%s0 + $0x18] sm:$0xff]
    %v19 = vld [vmem:[%s0 + $0x20] sm:$0xff]
    %v20 = vld [vmem:[%s0 + $0x28] sm:$0xff]
    %v21 = vld [vmem:[%s0 + $0x30] sm:$0xff]
    %v22 = vld [vmem:[%s0 + $0x38] sm:$0xff]
    %v23 = vld [vmem:[%s0 + $0x40] sm:$0xff]
    %v24 = vld [vmem:[%s0 + $0x48] sm:$0xff]
    %v25 = vld [vmem:[%s0 + $0x50] sm:$0xff]
    %v26 = vld [vmem:[%s0 + $0x58] sm:$0xff]
    %v27 = vld [vmem:[%s0 + $0x60] sm:$0xff]
    %v28 = vld [vmem:[%s0 + $0x68] sm:$0xff]
    %v29 = vld [vmem:[%s0 + $0x70] sm:$0xff]
    %v30 = vld [vmem:[%s0 + $0x78] sm:$0xff]
    %v31 = vld [vmem:[%s0 + $0x80] sm:$0xff]
    %v32 = vld [vmem:[%s0 + $0x88] sm:$0xff]
    %v33 = vld [vmem:[%s0 + $0x90] sm:$0xff]
    %v34 = vld [vmem:[%s0 + $0x98] sm:$0xff]
    %v35 = vld [vmem:[%s0 + $0xa0] sm:$0xff]
    %v36 = vld [vmem:[%s0 + $0xa8] sm:$0xff]
    %v37 = vld [vmem:[%s0 + $0xb0] sm:$0xff]
    %v38 = vld [vmem:[%s0 + $0xb8] sm:$0xff]
    %v39 = vld [vmem:[%s0 + $0xc0] sm:$0xff]
    %v40 = vld [vmem:[%s1] sm:$0xff]
    %v41 = vld [vmem:[%s1 + $0x8] sm:$0xff]
    %v42 = vld [vmem:[%s1 + $0x10] sm:$0xff]
    %v43 = vld [vmem:[%s1 + $0x18] sm:$0xff]
    %v44 = vld [vmem:[%s2] sm:$0x1]
    %v46 = vlaneseq
    %v47 = vshrl.u32 %v46, 7
    %v48 = vsub.s32 0, %v47
    %v49 = vrot.slane %v44, %v48
    %vm51 = vcmask 261120
    %v53 = vsel %vm51, %v15, 0
    %v56 = vsel %vm51, %v16, 0
    %v59 = vsel %vm51, %v17, 0
    %v62 = vsel %vm51, %v18, 0
    %v65 = vsel %vm51, %v19, 0
    %v68 = vsel %vm51, %v20, 0
    %v71 = vsel %vm51, %v21, 0
    %v74 = vsel %vm51, %v22, 0
    %v77 = vsel %vm51, %v23, 0
    %v80 = vsel %vm51, %v24, 0
    %v83 = vsel %vm51, %v25, 0
    %v86 = vsel %vm51, %v26, 0
    %v89 = vsel %vm51, %v27, 0
    %v92 = vsel %vm51, %v28, 0
    %v95 = vsel %vm51, %v29, 0
    %v98 = vsel %vm51, %v30, 0
    %v101 = vsel %vm51, %v31, 0
    %v104 = vsel %vm51, %v32, 0
    %v107 = vsel %vm51, %v33, 0
    %v110 = vsel %vm51, %v34, 0
    %v113 = vsel %vm51, %v35, 0
    %v116 = vsel %vm51, %v36, 0
    %v119 = vsel %vm51, %v37, 0
    %v122 = vsel %vm51, %v38, 0
    %v125 = vsel %vm51, %v39, 0
    %127 = vmatprep.subr.mxu0 0.0
    %128 = vmatpush1.msra.mxu0 0.0
    %129 = vmatprep.subr.mxu0 0.0
    %130 = vmatpush1.msra.mxu0 0.0
    %131 = vmatprep.subr.mxu0 0.0
    %132 = vmatpush1.msra.mxu0 0.0
    %133 = vmatprep.subr.mxu0 0.0
    %134 = vmatpush1.msra.mxu0 0.0
    %135 = vmatprep.subr.mxu0 0.0
    %136 = vmatpush1.msra.mxu0 0.0
    %137 = vmatprep.subr.mxu0 0.0
    %138 = vmatpush1.msra.mxu0 0.0
    %139 = vmatprep.subr.mxu0 0.0
    %140 = vmatpush1.msra.mxu0 0.0
    %141 = vmatprep.subr.mxu0 0.0
    %142 = vmatpush1.msra.mxu0 0.0
    %143 = vmatprep.subr.mxu0 0.0
    %144 = vmatpush1.msra.mxu0 0.0
    %145 = vmatprep.subr.mxu0 0.0
    %146 = vmatpush1.msra.mxu0 0.0
    %147 = vmatprep.subr.mxu0 0.0
    %148 = vmatpush1.msra.mxu0 0.0
    %149 = vmatprep.subr.mxu0 0.0
    %150 = vmatpush1.msra.mxu0 0.0
    %151 = vmatprep.subr.mxu0 0.0
    %152 = vmatpush1.msra.mxu0 %v43
    %153 = vmatprep.subr.mxu0 0.0
    %154 = vmatpush1.msra.mxu0 %v42
    %155 = vmatprep.subr.mxu0 0.0
    %156 = vmatpush1.msra.mxu0 %v41
    %157 = vmatprep.subr.mxu0 0.0
    %158 = vmatpush1.msra.mxu0 %v40
    %159 = vmatprep.subr.mxu0 0.0
    %160 = vmatpush2.msra.mxu0 0.0
    %161 = vmatprep.subr.mxu0 0.0
    %162 = vmatpush2.msra.mxu0 0.0
    %163 = vmatprep.subr.mxu0 0.0
    %164 = vmatpush2.msra.mxu0 0.0
    %165 = vmatprep.subr.mxu0 0.0
    %166 = vmatpush2.msra.mxu0 0.0
    %167 = vmatprep.subr.mxu0 0.0
    %168 = vmatpush2.msra.mxu0 0.0
    %169 = vmatprep.subr.mxu0 0.0
    %170 = vmatpush2.msra.mxu0 0.0
    %171 = vmatprep.subr.mxu0 0.0
    %172 = vmatpush2.msra.mxu0 0.0
    %173 = vmatprep.subr.mxu0 0.0
    %174 = vmatpush2.msra.mxu0 0.0
    %175 = vmatprep.subr.mxu0 0.0
    %176 = vmatpush2.msra.mxu0 0.0
    %177 = vmatprep.subr.mxu0 0.0
    %178 = vmatpush2.msra.mxu0 0.0
    %179 = vmatprep.subr.mxu0 0.0
    %180 = vmatpush2.msra.mxu0 0.0
    %181 = vmatprep.subr.mxu0 0.0
    %182 = vmatpush2.msra.mxu0 0.0
    %183 = vmatprep.subr.mxu0 0.0
    %184 = vmatpush2.msra.mxu0 0.0
    %185 = vmatprep.subr.mxu0 0.0
    %186 = vmatpush2.msra.mxu0 0.0
    %187 = vmatprep.subr.mxu0 0.0
    %188 = vmatpush2.msra.mxu0 0.0
    %189 = vmatprep.subr.mxu0 0.0
    %190 = vmatpush2.msra.mxu0 0.0
    %191 = vmatprep.mubr.f32.mxu0 0.0
    %192 = vmatmul.mubr.f32.gmra.mxu0 %v53
    %v193 = vpop.f32.mrf.mxu0
    %v194 = vadd.f32 %v49, %v193
    %v195 = vpop.f32.mrf.mxu0
    %196 = vmatprep.mubr.f32.mxu0 0.0
    %197 = vmatmul.mubr.f32.gmra.mxu0 %v56
    %v198 = vpop.f32.mrf.mxu0
    %v199 = vadd.f32 %v49, %v198
    %v200 = vpop.f32.mrf.mxu0
    %201 = vmatprep.mubr.f32.mxu0 0.0
    %202 = vmatmul.mubr.f32.gmra.mxu0 %v59
    %v203 = vpop.f32.mrf.mxu0
    %v204 = vadd.f32 %v49, %v203
    %v205 = vpop.f32.mrf.mxu0
    %206 = vmatprep.mubr.f32.mxu0 0.0
    %207 = vmatmul.mubr.f32.gmra.mxu0 %v62
    %v208 = vpop.f32.mrf.mxu0
    %v209 = vadd.f32 %v49, %v208
    %v210 = vpop.f32.mrf.mxu0
    %211 = vmatprep.mubr.f32.mxu0 0.0
    %212 = vmatmul.mubr.f32.gmra.mxu0 %v65
    %v213 = vpop.f32.mrf.mxu0
    %v214 = vadd.f32 %v49, %v213
    %v215 = vpop.f32.mrf.mxu0
    %216 = vmatprep.mubr.f32.mxu0 0.0
    %217 = vmatmul.mubr.f32.gmra.mxu0 %v68
    %v218 = vpop.f32.mrf.mxu0
    %v219 = vadd.f32 %v49, %v218
    %v220 = vpop.f32.mrf.mxu0
    %221 = vmatprep.mubr.f32.mxu0 0.0
    %222 = vmatmul.mubr.f32.gmra.mxu0 %v71
    %v223 = vpop.f32.mrf.mxu0
    %v224 = vadd.f32 %v49, %v223
    %v225 = vpop.f32.mrf.mxu0
    %226 = vmatprep.mubr.f32.mxu0 0.0
    %227 = vmatmul.mubr.f32.gmra.mxu0 %v74
    %v228 = vpop.f32.mrf.mxu0
    %v229 = vadd.f32 %v49, %v228
    %v230 = vpop.f32.mrf.mxu0
    %231 = vmatprep.mubr.f32.mxu0 0.0
    %232 = vmatmul.mubr.f32.gmra.mxu0 %v77
    %v233 = vpop.f32.mrf.mxu0
    %v234 = vadd.f32 %v49, %v233
    %v235 = vpop.f32.mrf.mxu0
    %236 = vmatprep.mubr.f32.mxu0 0.0
    %237 = vmatmul.mubr.f32.gmra.mxu0 %v80
    %v238 = vpop.f32.mrf.mxu0
    %v239 = vadd.f32 %v49, %v238
    %v240 = vpop.f32.mrf.mxu0
    %241 = vmatprep.mubr.f32.mxu0 0.0
    %242 = vmatmul.mubr.f32.gmra.mxu0 %v83
    %v243 = vpop.f32.mrf.mxu0
    %v244 = vadd.f32 %v49, %v243
    %v245 = vpop.f32.mrf.mxu0
    %246 = vmatprep.mubr.f32.mxu0 0.0
    %247 = vmatmul.mubr.f32.gmra.mxu0 %v86
    %v248 = vpop.f32.mrf.mxu0
    %v249 = vadd.f32 %v49, %v248
    %v250 = vpop.f32.mrf.mxu0
    %251 = vmatprep.mubr.f32.mxu0 0.0
    %252 = vmatmul.mubr.f32.gmra.mxu0 %v89
    %v253 = vpop.f32.mrf.mxu0
    %v254 = vadd.f32 %v49, %v253
    %v255 = vpop.f32.mrf.mxu0
    %256 = vmatprep.mubr.f32.mxu0 0.0
    %257 = vmatmul.mubr.f32.gmra.mxu0 %v92
    %v258 = vpop.f32.mrf.mxu0
    %v259 = vadd.f32 %v49, %v258
    %v260 = vpop.f32.mrf.mxu0
    %261 = vmatprep.mubr.f32.mxu0 0.0
    %262 = vmatmul.mubr.f32.gmra.mxu0 %v95
    %v263 = vpop.f32.mrf.mxu0
    %v264 = vadd.f32 %v49, %v263
    %v265 = vpop.f32.mrf.mxu0
    %266 = vmatprep.mubr.f32.mxu0 0.0
    %267 = vmatmul.mubr.f32.gmra.mxu0 %v98
    %v268 = vpop.f32.mrf.mxu0
    %v269 = vadd.f32 %v49, %v268
    %v270 = vpop.f32.mrf.mxu0
    %271 = vmatprep.mubr.f32.mxu0 0.0
    %272 = vmatmul.mubr.f32.gmra.mxu0 %v101
    %v273 = vpop.f32.mrf.mxu0
    %v274 = vadd.f32 %v49, %v273
    %v275 = vpop.f32.mrf.mxu0
    %276 = vmatprep.mubr.f32.mxu0 0.0
    %277 = vmatmul.mubr.f32.gmra.mxu0 %v104
    %v278 = vpop.f32.mrf.mxu0
    %v279 = vadd.f32 %v49, %v278
    %v280 = vpop.f32.mrf.mxu0
    %281 = vmatprep.mubr.f32.mxu0 0.0
    %282 = vmatmul.mubr.f32.gmra.mxu0 %v107
    %v283 = vpop.f32.mrf.mxu0
    %v284 = vadd.f32 %v49, %v283
    %v285 = vpop.f32.mrf.mxu0
    %286 = vmatprep.mubr.f32.mxu0 0.0
    %287 = vmatmul.mubr.f32.gmra.mxu0 %v110
    %v288 = vpop.f32.mrf.mxu0
    %v289 = vadd.f32 %v49, %v288
    %v290 = vpop.f32.mrf.mxu0
    %291 = vmatprep.mubr.f32.mxu0 0.0
    %292 = vmatmul.mubr.f32.gmra.mxu0 %v113
    %v293 = vpop.f32.mrf.mxu0
    %v294 = vadd.f32 %v49, %v293
    %v295 = vpop.f32.mrf.mxu0
    %296 = vmatprep.mubr.f32.mxu0 0.0
    %297 = vmatmul.mubr.f32.gmra.mxu0 %v116
    %v298 = vpop.f32.mrf.mxu0
    %v299 = vadd.f32 %v49, %v298
    %v300 = vpop.f32.mrf.mxu0
    %301 = vmatprep.mubr.f32.mxu0 0.0
    %302 = vmatmul.mubr.f32.gmra.mxu0 %v119
    %v303 = vpop.f32.mrf.mxu0
    %v304 = vadd.f32 %v49, %v303
    %v305 = vpop.f32.mrf.mxu0
    %306 = vmatprep.mubr.f32.mxu0 0.0
    %307 = vmatmul.mubr.f32.gmra.mxu0 %v122
    %v308 = vpop.f32.mrf.mxu0
    %v309 = vadd.f32 %v49, %v308
    %v310 = vpop.f32.mrf.mxu0
    %311 = vmatprep.mubr.f32.mxu0 0.0
    %312 = vmatmul.mubr.f32.gmra.mxu0 %v125
    %v313 = vpop.f32.mrf.mxu0
    %v314 = vadd.f32 %v49, %v313
    %v315 = vpop.f32.mrf.mxu0
    %316 = vdwg.mxu0
    %317 = vst [vmem:[#allocation2] sm:$0xff] %v194
    %318 = vst [vmem:[#allocation2 + $0x8] sm:$0xff] %v199
    %319 = vst [vmem:[#allocation2 + $0x10] sm:$0xff] %v204
    %320 = vst [vmem:[#allocation2 + $0x18] sm:$0xff] %v209
    %321 = vst [vmem:[#allocation2 + $0x20] sm:$0xff] %v214
    %322 = vst [vmem:[#allocation2 + $0x28] sm:$0xff] %v219
    %323 = vst [vmem:[#allocation2 + $0x30] sm:$0xff] %v224
    %324 = vst [vmem:[#allocation2 + $0x38] sm:$0xff] %v229
    %325 = vst [vmem:[#allocation2 + $0x40] sm:$0xff] %v234
    %326 = vst [vmem:[#allocation2 + $0x48] sm:$0xff] %v239
    %327 = vst [vmem:[#allocation2 + $0x50] sm:$0xff] %v244
    %328 = vst [vmem:[#allocation2 + $0x58] sm:$0xff] %v249
    %329 = vst [vmem:[#allocation2 + $0x60] sm:$0xff] %v254
    %330 = vst [vmem:[#allocation2 + $0x68] sm:$0xff] %v259
    %331 = vst [vmem:[#allocation2 + $0x70] sm:$0xff] %v264
    %332 = vst [vmem:[#allocation2 + $0x78] sm:$0xff] %v269
    %333 = vst [vmem:[#allocation2 + $0x80] sm:$0xff] %v274
    %334 = vst [vmem:[#allocation2 + $0x88] sm:$0xff] %v279
    %335 = vst [vmem:[#allocation2 + $0x90] sm:$0xff] %v284
    %336 = vst [vmem:[#allocation2 + $0x98] sm:$0xff] %v289
    %337 = vst [vmem:[#allocation2 + $0xa0] sm:$0xff] %v294
    %338 = vst [vmem:[#allocation2 + $0xa8] sm:$0xff] %v299
    %339 = vst [vmem:[#allocation2 + $0xb0] sm:$0xff] %v304
    %340 = vst [vmem:[#allocation2 + $0xb8] sm:$0xff] %v309
    %341 = vst [vmem:[#allocation2 + $0xc0] sm:$0xff] %v314
    // Predicated region
    $region14: #{_linear_forward_impl.1} parent=1 // pred_check
      _
    $region15: #{_linear_forward_impl.1} parent=1 // pred_check_branch
      %343 = sbr.rel (0) target = $region17
    $region16: #{_linear_forward_impl.1} parent=1 // pred_region
      %s345 = ssub.s32 3200, 3200
      %346 = vsyncadd [#allocation3], %s345
      %s347 = sshll.u32 [#allocation2], 4
      %s348 = int_to_ptr.vmem [resolvable:$true] %s347
      %353 = dma.vmem_to_hbm [thread:$0]  %s348, 3200, %s3, [#allocation3], 128, 128, 8
    $region17: #{_linear_forward_impl.1} parent=1 // pred_fallthru
      _
    // Predicated region
    $region18: #{_linear_forward_impl.1} parent=1 // pred_check
      _
    $region19: #{_linear_forward_impl.1} parent=1 // pred_check_branch
      %355 = sbr.rel (0) target = $region21
    $region20: #{_linear_forward_impl.1} parent=1 // pred_region
      %356 = dma.done [#allocation3], 3200
    $region21: #{_linear_forward_impl.1} parent=1 // pred_fallthru
      _
    %357 = vsyncpa [#allocation3], 1

// kernel: _linear_forward_impl.1
$region0: #{_linear_forward_impl.1}
  #allocation0 [shape = 'u32[]', space=smem, size = 0x4, offset = 0x4, fixed_abs, tag = 'smem constant byte address 0x4 - core index']
  #allocation1 [shape = 'u32[144,128]{1,0:T(1,128)}', space=vmem, size = 0x12000, scoped, tag = 'internal scratch']
  %s0 = inlined_call_operand.vmem [shape: f32[200,32], index: 0, kind: input, shape index: {}]
  %s1 = inlined_call_operand.vmem [shape: f32[32,128], index: 1, kind: input, shape index: {}]
  %s2 = inlined_call_operand.vmem [shape: f32[1,128], index: 2, kind: input, shape index: {}]
  %s3 = inlined_call_operand.hbm [shape: f32[200,128], index: 3, kind: output, shape index: {}]
  %s4 = sld [smem:[#allocation0]]
  $region22: #{_linear_forward_impl.1} parent=0
    _
  %s6 = ssub.s32 1, %s4
  %s7 = scalar_select 0, %s6, %s4
  $region1: #{_linear_forward_impl.1} parent=0
    #allocation2 [shape = 'u8[102400]{0}', space=vmem, size = 0x19000, scoped, tag = 'output window, operand 0, single buffered']
    #allocation3 [shape = 's32[1]{0}', space=sflag, size = 0x4, scoped, tag = 'scoped memory for _linear_forward_impl.1']
    %8 = vsyncpa [#allocation3], 0
    // Predicated region
    $region2: #{_linear_forward_impl.1} parent=1 // pred_check
      _
    $region3: #{_linear_forward_impl.1} parent=1 // pred_check_branch
      %10 = sbr.rel (0) target = $region5
    $region4: #{_linear_forward_impl.1} parent=1 // pred_region
      _
    $region5: #{_linear_forward_impl.1} parent=1 // pred_fallthru
      _
    // Predicated region
    $region6: #{_linear_forward_impl.1} parent=1 // pred_check
      _
    $region7: #{_linear_forward_impl.1} parent=1 // pred_check_branch
      %12 = sbr.rel (0) target = $region9
    $region8: #{_linear_forward_impl.1} parent=1 // pred_region
      _
    $region9: #{_linear_forward_impl.1} parent=1 // pred_fallthru
      _
    // Predicated region
    $region10: #{_linear_forward_impl.1} parent=1 // pred_check
      _
    $region11: #{_linear_forward_impl.1} parent=1 // pred_check_branch
      %14 = sbr.rel (0) target = $region13
    $region12: #{_linear_forward_impl.1} parent=1 // pred_region
      _
    $region13: #{_linear_forward_impl.1} parent=1 // pred_fallthru
      _
    %v15 = vld [vmem:[%s0] sm:$0xff]
    %v16 = vld [vmem:[%s0 + $0x8] sm:$0xff]
    %v17 = vld [vmem:[%s0 + $0x10] sm:$0xff]
    %v18 = vld [vmem:[%s0 + $0x18] sm:$0xff]
    %v19 = vld [vmem:[%s0 + $0x20] sm:$0xff]
    %v20 = vld [vmem:[%s0 + $0x28] sm:$0xff]
    %v21 = vld [vmem:[%s0 + $0x30] sm:$0xff]
    %v22 = vld [vmem:[%s0 + $0x38] sm:$0xff]
    %v23 = vld [vmem:[%s0 + $0x40] sm:$0xff]
    %v24 = vld [vmem:[%s0 + $0x48] sm:$0xff]
    %v25 = vld [vmem:[%s0 + $0x50] sm:$0xff]
    %v26 = vld [vmem:[%s0 + $0x58] sm:$0xff]
    %v27 = vld [vmem:[%s0 + $0x60] sm:$0xff]
    %v28 = vld [vmem:[%s0 + $0x68] sm:$0xff]
    %v29 = vld [vmem:[%s0 + $0x70] sm:$0xff]
    %v30 = vld [vmem:[%s0 + $0x78] sm:$0xff]
    %v31 = vld [vmem:[%s0 + $0x80] sm:$0xff]
    %v32 = vld [vmem:[%s0 + $0x88] sm:$0xff]
    %v33 = vld [vmem:[%s0 + $0x90] sm:$0xff]
    %v34 = vld [vmem:[%s0 + $0x98] sm:$0xff]
    %v35 = vld [vmem:[%s0 + $0xa0] sm:$0xff]
    %v36 = vld [vmem:[%s0 + $0xa8] sm:$0xff]
    %v37 = vld [vmem:[%s0 + $0xb0] sm:$0xff]
    %v38 = vld [vmem:[%s0 + $0xb8] sm:$0xff]
    %v39 = vld [vmem:[%s0 + $0xc0] sm:$0xff]
    %v40 = vld [vmem:[%s1] sm:$0xff]
    %v41 = vld [vmem:[%s1 + $0x8] sm:$0xff]
    %v42 = vld [vmem:[%s1 + $0x10] sm:$0xff]
    %v43 = vld [vmem:[%s1 + $0x18] sm:$0xff]
    %v44 = vld [vmem:[%s2] sm:$0x1]
    %v46 = vlaneseq
    %v47 = vshrl.u32 %v46, 7
    %v48 = vsub.s32 0, %v47
    %v49 = vrot.slane %v44, %v48
    %vm51 = vcmask 261120
    %v53 = vsel %vm51, %v15, 0
    %v56 = vsel %vm51, %v16, 0
    %v59 = vsel %vm51, %v17, 0
    %v62 = vsel %vm51, %v18, 0
    %v65 = vsel %vm51, %v19, 0
    %v68 = vsel %vm51, %v20, 0
    %v71 = vsel %vm51, %v21, 0
    %v74 = vsel %vm51, %v22, 0
    %v77 = vsel %vm51, %v23, 0
    %v80 = vsel %vm51, %v24, 0
    %v83 = vsel %vm51, %v25, 0
    %v86 = vsel %vm51, %v26, 0
    %v89 = vsel %vm51, %v27, 0
    %v92 = vsel %vm51, %v28, 0
    %v95 = vsel %vm51, %v29, 0
    %v98 = vsel %vm51, %v30, 0
    %v101 = vsel %vm51, %v31, 0
    %v104 = vsel %vm51, %v32, 0
    %v107 = vsel %vm51, %v33, 0
    %v110 = vsel %vm51, %v34, 0
    %v113 = vsel %vm51, %v35, 0
    %v116 = vsel %vm51, %v36, 0
    %v119 = vsel %vm51, %v37, 0
    %v122 = vsel %vm51, %v38, 0
    %v125 = vsel %vm51, %v39, 0
    %127 = vmatprep.subr.mxu0 0.0
    %128 = vmatpush1.msra.mxu0 0.0
    %129 = vmatprep.subr.mxu0 0.0
    %130 = vmatpush1.msra.mxu0 0.0
    %131 = vmatprep.subr.mxu0 0.0
    %132 = vmatpush1.msra.mxu0 0.0
    %133 = vmatprep.subr.mxu0 0.0
    %134 = vmatpush1.msra.mxu0 0.0
    %135 = vmatprep.subr.mxu0 0.0
    %136 = vmatpush1.msra.mxu0 0.0
    %137 = vmatprep.subr.mxu0 0.0
    %138 = vmatpush1.msra.mxu0 0.0
    %139 = vmatprep.subr.mxu0 0.0
    %140 = vmatpush1.msra.mxu0 0.0
    %141 = vmatprep.subr.mxu0 0.0
    %142 = vmatpush1.msra.mxu0 0.0
    %143 = vmatprep.subr.mxu0 0.0
    %144 = vmatpush1.msra.mxu0 0.0
    %145 = vmatprep.subr.mxu0 0.0
    %146 = vmatpush1.msra.mxu0 0.0
    %147 = vmatprep.subr.mxu0 0.0
    %148 = vmatpush1.msra.mxu0 0.0
    %149 = vmatprep.subr.mxu0 0.0
    %150 = vmatpush1.msra.mxu0 0.0
    %151 = vmatprep.subr.mxu0 0.0
    %152 = vmatpush1.msra.mxu0 %v43
    %153 = vmatprep.subr.mxu0 0.0
    %154 = vmatpush1.msra.mxu0 %v42
    %155 = vmatprep.subr.mxu0 0.0
    %156 = vmatpush1.msra.mxu0 %v41
    %157 = vmatprep.subr.mxu0 0.0
    %158 = vmatpush1.msra.mxu0 %v40
    %159 = vmatprep.subr.mxu0 0.0
    %160 = vmatpush2.msra.mxu0 0.0
    %161 = vmatprep.subr.mxu0 0.0
    %162 = vmatpush2.msra.mxu0 0.0
    %163 = vmatprep.subr.mxu0 0.0
    %164 = vmatpush2.msra.mxu0 0.0
    %165 = vmatprep.subr.mxu0 0.0
    %166 = vmatpush2.msra.mxu0 0.0
    %167 = vmatprep.subr.mxu0 0.0
    %168 = vmatpush2.msra.mxu0 0.0
    %169 = vmatprep.subr.mxu0 0.0
    %170 = vmatpush2.msra.mxu0 0.0
    %171 = vmatprep.subr.mxu0 0.0
    %172 = vmatpush2.msra.mxu0 0.0
    %173 = vmatprep.subr.mxu0 0.0
    %174 = vmatpush2.msra.mxu0 0.0
    %175 = vmatprep.subr.mxu0 0.0
    %176 = vmatpush2.msra.mxu0 0.0
    %177 = vmatprep.subr.mxu0 0.0
    %178 = vmatpush2.msra.mxu0 0.0
    %179 = vmatprep.subr.mxu0 0.0
    %180 = vmatpush2.msra.mxu0 0.0
    %181 = vmatprep.subr.mxu0 0.0
    %182 = vmatpush2.msra.mxu0 0.0
    %183 = vmatprep.subr.mxu0 0.0
    %184 = vmatpush2.msra.mxu0 0.0
    %185 = vmatprep.subr.mxu0 0.0
    %186 = vmatpush2.msra.mxu0 0.0
    %187 = vmatprep.subr.mxu0 0.0
    %188 = vmatpush2.msra.mxu0 0.0
    %189 = vmatprep.subr.mxu0 0.0
    %190 = vmatpush2.msra.mxu0 0.0
    %191 = vmatprep.mubr.f32.mxu0 0.0
    %192 = vmatmul.mubr.f32.gmra.mxu0 %v53
    %v193 = vpop.f32.mrf.mxu0
    %v194 = vadd.f32 %v49, %v193
    %v195 = vpop.f32.mrf.mxu0
    %196 = vmatprep.mubr.f32.mxu0 0.0
    %197 = vmatmul.mubr.f32.gmra.mxu0 %v56
    %v198 = vpop.f32.mrf.mxu0
    %v199 = vadd.f32 %v49, %v198
    %v200 = vpop.f32.mrf.mxu0
    %201 = vmatprep.mubr.f32.mxu0 0.0
    %202 = vmatmul.mubr.f32.gmra.mxu0 %v59
    %v203 = vpop.f32.mrf.mxu0
    %v204 = vadd.f32 %v49, %v203
    %v205 = vpop.f32.mrf.mxu0
    %206 = vmatprep.mubr.f32.mxu0 0.0
    %207 = vmatmul.mubr.f32.gmra.mxu0 %v62
    %v208 = vpop.f32.mrf.mxu0
    %v209 = vadd.f32 %v49, %v208
    %v210 = vpop.f32.mrf.mxu0
    %211 = vmatprep.mubr.f32.mxu0 0.0
    %212 = vmatmul.mubr.f32.gmra.mxu0 %v65
    %v213 = vpop.f32.mrf.mxu0
    %v214 = vadd.f32 %v49, %v213
    %v215 = vpop.f32.mrf.mxu0
    %216 = vmatprep.mubr.f32.mxu0 0.0
    %217 = vmatmul.mubr.f32.gmra.mxu0 %v68
    %v218 = vpop.f32.mrf.mxu0
    %v219 = vadd.f32 %v49, %v218
    %v220 = vpop.f32.mrf.mxu0
    %221 = vmatprep.mubr.f32.mxu0 0.0
    %222 = vmatmul.mubr.f32.gmra.mxu0 %v71
    %v223 = vpop.f32.mrf.mxu0
    %v224 = vadd.f32 %v49, %v223
    %v225 = vpop.f32.mrf.mxu0
    %226 = vmatprep.mubr.f32.mxu0 0.0
    %227 = vmatmul.mubr.f32.gmra.mxu0 %v74
    %v228 = vpop.f32.mrf.mxu0
    %v229 = vadd.f32 %v49, %v228
    %v230 = vpop.f32.mrf.mxu0
    %231 = vmatprep.mubr.f32.mxu0 0.0
    %232 = vmatmul.mubr.f32.gmra.mxu0 %v77
    %v233 = vpop.f32.mrf.mxu0
    %v234 = vadd.f32 %v49, %v233
    %v235 = vpop.f32.mrf.mxu0
    %236 = vmatprep.mubr.f32.mxu0 0.0
    %237 = vmatmul.mubr.f32.gmra.mxu0 %v80
    %v238 = vpop.f32.mrf.mxu0
    %v239 = vadd.f32 %v49, %v238
    %v240 = vpop.f32.mrf.mxu0
    %241 = vmatprep.mubr.f32.mxu0 0.0
    %242 = vmatmul.mubr.f32.gmra.mxu0 %v83
    %v243 = vpop.f32.mrf.mxu0
    %v244 = vadd.f32 %v49, %v243
    %v245 = vpop.f32.mrf.mxu0
    %246 = vmatprep.mubr.f32.mxu0 0.0
    %247 = vmatmul.mubr.f32.gmra.mxu0 %v86
    %v248 = vpop.f32.mrf.mxu0
    %v249 = vadd.f32 %v49, %v248
    %v250 = vpop.f32.mrf.mxu0
    %251 = vmatprep.mubr.f32.mxu0 0.0
    %252 = vmatmul.mubr.f32.gmra.mxu0 %v89
    %v253 = vpop.f32.mrf.mxu0
    %v254 = vadd.f32 %v49, %v253
    %v255 = vpop.f32.mrf.mxu0
    %256 = vmatprep.mubr.f32.mxu0 0.0
    %257 = vmatmul.mubr.f32.gmra.mxu0 %v92
    %v258 = vpop.f32.mrf.mxu0
    %v259 = vadd.f32 %v49, %v258
    %v260 = vpop.f32.mrf.mxu0
    %261 = vmatprep.mubr.f32.mxu0 0.0
    %262 = vmatmul.mubr.f32.gmra.mxu0 %v95
    %v263 = vpop.f32.mrf.mxu0
    %v264 = vadd.f32 %v49, %v263
    %v265 = vpop.f32.mrf.mxu0
    %266 = vmatprep.mubr.f32.mxu0 0.0
    %267 = vmatmul.mubr.f32.gmra.mxu0 %v98
    %v268 = vpop.f32.mrf.mxu0
    %v269 = vadd.f32 %v49, %v268
    %v270 = vpop.f32.mrf.mxu0
    %271 = vmatprep.mubr.f32.mxu0 0.0
    %272 = vmatmul.mubr.f32.gmra.mxu0 %v101
    %v273 = vpop.f32.mrf.mxu0
    %v274 = vadd.f32 %v49, %v273
    %v275 = vpop.f32.mrf.mxu0
    %276 = vmatprep.mubr.f32.mxu0 0.0
    %277 = vmatmul.mubr.f32.gmra.mxu0 %v104
    %v278 = vpop.f32.mrf.mxu0
    %v279 = vadd.f32 %v49, %v278
    %v280 = vpop.f32.mrf.mxu0
    %281 = vmatprep.mubr.f32.mxu0 0.0
    %282 = vmatmul.mubr.f32.gmra.mxu0 %v107
    %v283 = vpop.f32.mrf.mxu0
    %v284 = vadd.f32 %v49, %v283
    %v285 = vpop.f32.mrf.mxu0
    %286 = vmatprep.mubr.f32.mxu0 0.0
    %287 = vmatmul.mubr.f32.gmra.mxu0 %v110
    %v288 = vpop.f32.mrf.mxu0
    %v289 = vadd.f32 %v49, %v288
    %v290 = vpop.f32.mrf.mxu0
    %291 = vmatprep.mubr.f32.mxu0 0.0
    %292 = vmatmul.mubr.f32.gmra.mxu0 %v113
    %v293 = vpop.f32.mrf.mxu0
    %v294 = vadd.f32 %v49, %v293
    %v295 = vpop.f32.mrf.mxu0
    %296 = vmatprep.mubr.f32.mxu0 0.0
    %297 = vmatmul.mubr.f32.gmra.mxu0 %v116
    %v298 = vpop.f32.mrf.mxu0
    %v299 = vadd.f32 %v49, %v298
    %v300 = vpop.f32.mrf.mxu0
    %301 = vmatprep.mubr.f32.mxu0 0.0
    %302 = vmatmul.mubr.f32.gmra.mxu0 %v119
    %v303 = vpop.f32.mrf.mxu0
    %v304 = vadd.f32 %v49, %v303
    %v305 = vpop.f32.mrf.mxu0
    %306 = vmatprep.mubr.f32.mxu0 0.0
    %307 = vmatmul.mubr.f32.gmra.mxu0 %v122
    %v308 = vpop.f32.mrf.mxu0
    %v309 = vadd.f32 %v49, %v308
    %v310 = vpop.f32.mrf.mxu0
    %311 = vmatprep.mubr.f32.mxu0 0.0
    %312 = vmatmul.mubr.f32.gmra.mxu0 %v125
    %v313 = vpop.f32.mrf.mxu0
    %v314 = vadd.f32 %v49, %v313
    %v315 = vpop.f32.mrf.mxu0
    %316 = vdwg.mxu0
    %317 = vst [vmem:[#allocation2] sm:$0xff] %v194
    %318 = vst [vmem:[#allocation2 + $0x8] sm:$0xff] %v199
    %319 = vst [vmem:[#allocation2 + $0x10] sm:$0xff] %v204
    %320 = vst [vmem:[#allocation2 + $0x18] sm:$0xff] %v209
    %321 = vst [vmem:[#allocation2 + $0x20] sm:$0xff] %v214
    %322 = vst [vmem:[#allocation2 + $0x28] sm:$0xff] %v219
    %323 = vst [vmem:[#allocation2 + $0x30] sm:$0xff] %v224
    %324 = vst [vmem:[#allocation2 + $0x38] sm:$0xff] %v229
    %325 = vst [vmem:[#allocation2 + $0x40] sm:$0xff] %v234
    %326 = vst [vmem:[#allocation2 + $0x48] sm:$0xff] %v239
    %327 = vst [vmem:[#allocation2 + $0x50] sm:$0xff] %v244
    %328 = vst [vmem:[#allocation2 + $0x58] sm:$0xff] %v249
    %329 = vst [vmem:[#allocation2 + $0x60] sm:$0xff] %v254
    %330 = vst [vmem:[#allocation2 + $0x68] sm:$0xff] %v259
    %331 = vst [vmem:[#allocation2 + $0x70] sm:$0xff] %v264
    %332 = vst [vmem:[#allocation2 + $0x78] sm:$0xff] %v269
    %333 = vst [vmem:[#allocation2 + $0x80] sm:$0xff] %v274
    %334 = vst [vmem:[#allocation2 + $0x88] sm:$0xff] %v279
    %335 = vst [vmem:[#allocation2 + $0x90] sm:$0xff] %v284
    %336 = vst [vmem:[#allocation2 + $0x98] sm:$0xff] %v289
    %337 = vst [vmem:[#allocation2 + $0xa0] sm:$0xff] %v294
    %338 = vst [vmem:[#allocation2 + $0xa8] sm:$0xff] %v299
    %339 = vst [vmem:[#allocation2 + $0xb0] sm:$0xff] %v304
    %340 = vst [vmem:[#allocation2 + $0xb8] sm:$0xff] %v309
    %341 = vst [vmem:[#allocation2 + $0xc0] sm:$0xff] %v314
    // Predicated region
    $region14: #{_linear_forward_impl.1} parent=1 // pred_check
      _
    $region15: #{_linear_forward_impl.1} parent=1 // pred_check_branch
      %343 = sbr.rel (0) target = $region17
    $region16: #{_linear_forward_impl.1} parent=1 // pred_region
      %s345 = ssub.s32 3200, 3200
      %346 = vsyncadd [#allocation3], %s345
      %s347 = sshll.u32 [#allocation2], 4
      %s348 = int_to_ptr.vmem [resolvable:$true] %s347
      %353 = dma.vmem_to_hbm [thread:$0]  %s348, 3200, %s3, [#allocation3], 128, 128, 8
    $region17: #{_linear_forward_impl.1} parent=1 // pred_fallthru
      _
    // Predicated region
    $region18: #{_linear_forward_impl.1} parent=1 // pred_check
      _
    $region19: #{_linear_forward_impl.1} parent=1 // pred_check_branch
      %355 = sbr.rel (0) target = $region21
    $region20: #{_linear_forward_impl.1} parent=1 // pred_region
      %356 = dma.done [#allocation3], 3200
    $region21: #{_linear_forward_impl.1} parent=1 // pred_fallthru
      _
    %357 = vsyncpa [#allocation3], 1

</llo_original>
